<compile_context>
chip_gen: v5e
topology: v5e:2x2
jax: 0.10.0
libtpu: 0.0.40
codegen_flags: <defaults>
</compile_context>

<pallas_src>
import functools

import jax
import jax.numpy as jnp
from jax import lax
from jax.experimental import pallas as pl
from jax.experimental.pallas import tpu as pltpu

ALPHA = 0.25
GAMMA = 2.0
LANES = 128
SLAB = 64            # compute-chunk rows inside a grid block (bounds vreg pressure)
TM_MAX = 4096        # DMA tile rows: 2 inputs x 2 bufs x 4096*128*4B = 8 MiB VMEM
SMALL_N_FAST_PATH = 64 * 1024   # below this, plain XLA fusion beats kernel dispatch


def _combined_loss_kernel(pred_ref, tgt_ref, out_ref, acc_ref, *,
                          alpha, gamma, tm, slab, n_valid,
                          blocks_per_core, needs_mask):
    c = pl.program_id(0)            # core-slice ("parallel")
    i = pl.program_id(1)            # row-block within the core-slice ("arbitrary")

    @pl.when(i == 0)
    def _init():
        acc_ref[...] = jnp.zeros_like(acc_ref)

    # Logical (unclamped) flat-element offset of this step's block.
    block_start = (c * blocks_per_core + i) * (tm * LANES)
    nslabs = tm // slab

    def accumulate(masked):
        def slab_fn(s, carry):
            r0 = pl.multiple_of(s * slab, slab)
            x = pred_ref[pl.ds(r0, slab), :].astype(jnp.float32)
            t = tgt_ref[pl.ds(r0, slab), :].astype(jnp.float32)
            # Numerically-stable BCEWithLogits (matches torch.nn.BCEWithLogitsLoss):
            #   bce = max(x, 0) - x*t + log1p(exp(-|x|))
            bce = jnp.maximum(x, 0.0) - x * t + jnp.log1p(jnp.exp(-jnp.abs(x)))
            pt = jnp.exp(-bce)
            u = 1.0 - pt
            if gamma == 2.0:
                mod = u * u                       # avoid pow -> exp(gamma*log(u))
            elif gamma == 1.0:
                mod = u
            else:
                mod = jnp.power(u, gamma)
            total = bce + alpha * mod * bce
            if masked:
                # Mask out padded / out-of-range elements by LOGICAL flat index
                # (select, so garbage/NaN from boundary-block padding is dropped).
                row = lax.broadcasted_iota(jnp.int32, (slab, LANES), 0)
                lane = lax.broadcasted_iota(jnp.int32, (slab, LANES), 1)
                gidx = block_start + (r0 + row) * LANES + lane
                total = jnp.where(gidx < n_valid, total, 0.0)
            # Per-(sublane, lane) partial sums: pure VPU adds in the steady state.
            acc_ref[...] += total.reshape(slab // 8, 8, LANES).sum(axis=0)
            return carry

        if nslabs == 1:
            slab_fn(0, 0)
        else:
            lax.fori_loop(0, nslabs, slab_fn, 0, unroll=False)

    if needs_mask:
        # Only the tail step(s) pay for masking; interior steps take the clean path.
        block_end = block_start + tm * LANES

        @pl.when(block_end <= n_valid)
        def _unmasked():
            accumulate(False)

        @pl.when(block_end > n_valid)
        def _masked():
            accumulate(True)
    else:
        accumulate(False)

    @pl.when(i == pl.num_programs(1) - 1)
    def _finalize():
        # Single cross-lane/sublane reduce per core, only at the very end.
        out_ref[0, 0] = jnp.sum(acc_ref[...])


def _sublane_granularity(dtype):
    itemsize = jnp.dtype(dtype).itemsize
    return 8 * max(1, 4 // itemsize)   # f32 -> 8, bf16/f16 -> 16, int8/fp8 -> 32


@functools.partial(jax.jit, static_argnames=("alpha", "gamma"))
def combined_loss_pallas(pred, target, alpha=ALPHA, gamma=GAMMA):
    """mean(bce + alpha*(1-exp(-bce))**gamma * bce), bce = BCEWithLogits(pred, target)."""
    assert pred.shape == target.shape
    n_valid = int(pred.size)
    assert n_valid > 0

    # Keep native dtypes (no wrapper upcast); the kernel computes in f32.
    flat_p = pred.reshape(-1)
    flat_t = target.reshape(-1)

    gran = max(_sublane_granularity(pred.dtype), _sublane_granularity(target.dtype))
    m = pl.cdiv(n_valid, LANES)                      # lane-dense rows of 128

    if m < 2 * SLAB:
        # Small problem: one block, whole thing; tiny row pad so block == array.
        rows = pl.cdiv(m, gran) * gran
        tm = rows
        slab = tm
    else:
        # Large problem: never pad to the tile size -- the ragged tail (partial
        # boundary block) is masked in-kernel instead.
        rows = m
        tm = min(TM_MAX, max(SLAB, (m // (SLAB * 2)) * SLAB))
        slab = SLAB

    padded = rows * LANES
    if padded != n_valid:
        # TODO(synk): when N % 128 != 0 a tiny pad (< gran*128 elems) is still
        # needed to view the data as a (rows, 128) slab; this is one XLA copy.
        flat_p = jnp.pad(flat_p, (0, padded - n_valid))
        flat_t = jnp.pad(flat_t, (0, padded - n_valid))

    p2d = flat_p.reshape(rows, LANES)
    t2d = flat_t.reshape(rows, LANES)

    num_blocks = pl.cdiv(rows, tm)
    ncores = 1 if num_blocks == 1 else 2             # v7x: 2 TCs; harmless elsewhere
    blocks_per_core = pl.cdiv(num_blocks, ncores)
    grid = (ncores, blocks_per_core)
    needs_mask = (ncores * blocks_per_core * tm * LANES) != n_valid
    last_block = num_blocks - 1

    def row_block_index(c, i):
        # Clamp so a core's logical overflow block never issues an OOB DMA;
        # its contribution is zeroed by the logical-index mask in the kernel.
        return (jnp.minimum(c * blocks_per_core + i, last_block), 0)

    kernel = functools.partial(
        _combined_loss_kernel,
        alpha=alpha, gamma=gamma, tm=tm, slab=slab, n_valid=n_valid,
        blocks_per_core=blocks_per_core, needs_mask=needs_mask)

    partial_sums = pl.pallas_call(
        kernel,
        out_shape=jax.ShapeDtypeStruct((ncores, 1), jnp.float32),
        grid_spec=pltpu.PrefetchScalarGridSpec(
            num_scalar_prefetch=0,
            grid=grid,
            in_specs=[
                pl.BlockSpec((tm, LANES), row_block_index),
                pl.BlockSpec((tm, LANES), row_block_index),
            ],
            out_specs=pl.BlockSpec((1, 1), lambda c, i: (c, 0),
                                   memory_space=pltpu.MemorySpace.SMEM),
            scratch_shapes=[pltpu.VMEM((8, LANES), jnp.float32)],
        ),
        compiler_params=pltpu.CompilerParams(
            dimension_semantics=("parallel", "arbitrary")),
    )(p2d, t2d)

    return jnp.sum(partial_sums) / jnp.float32(n_valid)


def _combined_loss_jnp(pred, target, alpha=ALPHA, gamma=GAMMA):
    """Pure-jnp reference / small-N fast path (identical math)."""
    x = pred.astype(jnp.float32)
    t = target.astype(jnp.float32)
    bce = jnp.maximum(x, 0.0) - x * t + jnp.log1p(jnp.exp(-jnp.abs(x)))
    pt = jnp.exp(-bce)
    focal = alpha * (1.0 - pt) ** gamma * bce
    return jnp.mean(bce + focal)


def combined_loss(pred, target, alpha=ALPHA, gamma=GAMMA):
    """CombinedLoss.forward: small inputs skip Pallas (dispatch-latency bound)."""
    if pred.size < SMALL_N_FAST_PATH:
        return _combined_loss_jnp(pred, target, alpha, gamma)
    return combined_loss_pallas(pred, target, alpha=alpha, gamma=gamma)


if __name__ == "__main__":
    key = jax.random.PRNGKey(0)
    k1, k2, k3, k4 = jax.random.split(key, 4)

    # Shipped module shape: NCHW (2, 4, 16, 16) logits + {0,1} targets.
    pred = jax.random.normal(k1, (2, 4, 16, 16), dtype=jnp.float32)
    target = (jax.random.uniform(k2, (2, 4, 16, 16)) > 0.5).astype(jnp.float32)
    loss = combined_loss_pallas(pred, target)
    jax.block_until_ready(loss)
    ref = _combined_loss_jnp(pred, target)
    assert jnp.allclose(loss, ref, rtol=1e-5, atol=1e-5), (loss, ref)

    # Larger, ragged case: exercises multi-block grid, the 2-core split, the
    # partial boundary block and the in-kernel tail mask.
    pred2 = jax.random.normal(k3, (3, 7, 61, 67), dtype=jnp.float32)
    target2 = (jax.random.uniform(k4, (3, 7, 61, 67)) > 0.5).astype(jnp.float32)
    loss2 = combined_loss_pallas(pred2, target2)
    jax.block_until_ready(loss2)
    ref2 = _combined_loss_jnp(pred2, target2)
    assert jnp.allclose(loss2, ref2, rtol=1e-5, atol=1e-5), (loss2, ref2)

    print("KERNEL_OK")
</pallas_src>

<mosaic_0001>
module attributes {stable_mosaic.version = 11 : i64} {
  func.func @_combined_loss_kernel(%arg0: i32, %arg1: i32, %arg2: memref<16x128xf32, #tpu.memory_space<vmem>>, %arg3: memref<16x128xf32, #tpu.memory_space<vmem>>, %arg4: memref<1x1xf32, #tpu.memory_space<smem>>, %arg5: memref<8x128xf32, #tpu.memory_space<vmem>>) attributes {dimension_semantics = [#tpu.dimension_semantics<parallel>, #tpu.dimension_semantics<arbitrary>], iteration_bounds = array<i64: 1, 1>, scalar_prefetch = 0 : i64, scratch_operands = 1 : i64, tpu.core_type = #tpu.core_type<tc>, window_params = [{transform_indices = @transform_0, window_bounds = array<i64: 16, 128>}, {transform_indices = @transform_1, window_bounds = array<i64: 16, 128>}, {transform_indices = @transform_2, window_bounds = array<i64: 1, 1>}]} {
    %c0_i32 = arith.constant 0 : i32
    %0 = arith.cmpi eq, %arg1, %c0_i32 : i32
    %1 = arith.extui %0 : i1 to i32
    %c0_i32_0 = arith.constant 0 : i32
    %2 = arith.cmpi ne, %1, %c0_i32_0 : i32
    scf.if %2 {
      %cst_14 = arith.constant 0.000000e+00 : f32
      %36 = vector.broadcast %cst_14 : f32 to vector<8x128xf32>
      %c0_15 = arith.constant 0 : index
      %c0_16 = arith.constant 0 : index
      %37 = vector.load %arg5[%c0_15, %c0_16] : memref<8x128xf32, #tpu.memory_space<vmem>>, vector<8x128xf32>
      tpu.vector_store %arg5[%c0_15, %c0_16], %36 {strides = array<i32>} : memref<8x128xf32, #tpu.memory_space<vmem>>, vector<8x128xf32>,
    } else {
    }
    %c0_i32_1 = arith.constant 0 : i32
    %3 = tpu.assume_multiple %c0_i32_1, 16 : i32
    %4 = arith.index_cast %3 : i32 to index
    %c0 = arith.constant 0 : index
    %5 = vector.load %arg2[%4, %c0] : memref<16x128xf32, #tpu.memory_space<vmem>>, vector<16x128xf32>
    %6 = arith.index_cast %3 : i32 to index
    %c0_2 = arith.constant 0 : index
    %7 = vector.load %arg3[%6, %c0_2] : memref<16x128xf32, #tpu.memory_space<vmem>>, vector<16x128xf32>
    %cst = arith.constant 0.000000e+00 : f32
    %8 = vector.broadcast %cst : f32 to vector<16x128xf32>
    %9 = arith.maximumf %5, %8 : vector<16x128xf32>
    %10 = arith.mulf %5, %7 : vector<16x128xf32>
    %11 = arith.subf %9, %10 : vector<16x128xf32>
    %12 = math.absf %5 : vector<16x128xf32>
    %cst_3 = arith.constant 0.000000e+00 : f32
    %13 = vector.broadcast %cst_3 : f32 to vector<16x128xf32>
    %14 = arith.subf %13, %12 : vector<16x128xf32>
    %15 = math.exp %14 : vector<16x128xf32>
    %16 = math.log1p %15 : vector<16x128xf32>
    %17 = arith.addf %11, %16 : vector<16x128xf32>
    %cst_4 = arith.constant 0.000000e+00 : f32
    %18 = vector.broadcast %cst_4 : f32 to vector<16x128xf32>
    %19 = arith.subf %18, %17 : vector<16x128xf32>
    %20 = math.exp %19 : vector<16x128xf32>
    %cst_5 = arith.constant 1.000000e+00 : f32
    %21 = vector.broadcast %cst_5 : f32 to vector<16x128xf32>
    %22 = arith.subf %21, %20 : vector<16x128xf32>
    %23 = arith.mulf %22, %22 : vector<16x128xf32>
    %cst_6 = arith.constant 2.500000e-01 : f32
    %24 = vector.broadcast %cst_6 : f32 to vector<16x128xf32>
    %25 = arith.mulf %24, %23 : vector<16x128xf32>
    %26 = arith.mulf %25, %17 : vector<16x128xf32>
    %27 = arith.addf %17, %26 : vector<16x128xf32>
    %c0_7 = arith.constant 0 : index
    %c0_8 = arith.constant 0 : index
    %28 = vector.load %arg5[%c0_7, %c0_8] : memref<8x128xf32, #tpu.memory_space<vmem>>, vector<8x128xf32>
    %29 = vector.shape_cast %27 : vector<16x128xf32> to vector<2x8x128xf32>
    %cst_9 = arith.constant dense<0.000000e+00> : vector<8x128xf32>
    %30 = vector.multi_reduction <add>, %29, %cst_9 [0] : vector<2x8x128xf32> to vector<8x128xf32>
    %31 = arith.addf %28, %30 : vector<8x128xf32>
    %c0_10 = arith.constant 0 : index
    %c0_11 = arith.constant 0 : index
    %32 = vector.load %arg5[%c0_10, %c0_11] : memref<8x128xf32, #tpu.memory_space<vmem>>, vector<8x128xf32>
    tpu.vector_store %arg5[%c0_10, %c0_11], %31 {strides = array<i32>} : memref<8x128xf32, #tpu.memory_space<vmem>>, vector<8x128xf32>,
    %c0_i32_12 = arith.constant 0 : i32
    %33 = arith.cmpi eq, %arg1, %c0_i32_12 : i32
    %34 = arith.extui %33 : i1 to i32
    %c0_i32_13 = arith.constant 0 : i32
    %35 = arith.cmpi ne, %34, %c0_i32_13 : i32
    scf.if %35 {
      %c0_14 = arith.constant 0 : index
      %c0_15 = arith.constant 0 : index
      %36 = vector.load %arg5[%c0_14, %c0_15] : memref<8x128xf32, #tpu.memory_space<vmem>>, vector<8x128xf32>
      %37 = vector.shape_cast %36 : vector<8x128xf32> to vector<1x8x128xf32>
      %cst_16 = arith.constant dense<0.000000e+00> : vector<1xf32>
      %38 = vector.multi_reduction <add>, %37, %cst_16 [1, 2] : vector<1x8x128xf32> to vector<1xf32>
      %39 = vector.shape_cast %38 : vector<1xf32> to vector<1x1x1xf32>
      %40 = vector.extract %39[0, 0, 0] : f32 from vector<1x1x1xf32>
      %c0_17 = arith.constant 0 : index
      %c0_18 = arith.constant 0 : index
      %41 = memref.load %arg4[%c0_17, %c0_18] : memref<1x1xf32, #tpu.memory_space<smem>>
      memref.store %40, %arg4[%c0_17, %c0_18] : memref<1x1xf32, #tpu.memory_space<smem>>
    } else {
    }
    return
  }
  func.func @transform_0(%arg0: i32, %arg1: i32) -> (i32, i32) {
    %c1_i32 = arith.constant 1 : i32
    %0 = arith.muli %arg0, %c1_i32 : i32
    %1 = arith.addi %0, %arg1 : i32
    %c0_i32 = arith.constant 0 : i32
    %2 = arith.minsi %1, %c0_i32 : i32
    %c0_i32_0 = arith.constant 0 : i32
    %c0_i32_1 = arith.constant 0 : i32
    return %2, %c0_i32_0 : i32, i32
  }
  func.func @transform_1(%arg0: i32, %arg1: i32) -> (i32, i32) {
    %c1_i32 = arith.constant 1 : i32
    %0 = arith.muli %arg0, %c1_i32 : i32
    %1 = arith.addi %0, %arg1 : i32
    %c0_i32 = arith.constant 0 : i32
    %2 = arith.minsi %1, %c0_i32 : i32
    %c0_i32_0 = arith.constant 0 : i32
    %c0_i32_1 = arith.constant 0 : i32
    return %2, %c0_i32_0 : i32, i32
  }
  func.func @transform_2(%arg0: i32, %arg1: i32) -> (i32, i32) {
    %c0_i32 = arith.constant 0 : i32
    %c0_i32_0 = arith.constant 0 : i32
    return %arg0, %c0_i32 : i32, i32
  }
}

</mosaic_0001>

<llo_original>
// kernel: combined_loss_pallas.1
$region0: #{combined_loss_pallas.1}
  #allocation0 [shape = 'u32[]', space=smem, size = 0x4, offset = 0x4, fixed_abs, tag = 'smem constant byte address 0x4 - core index']
  #allocation1 [shape = 'u32[72,128]{1,0:T(1,128)}', space=vmem, size = 0x9000, scoped, tag = 'internal scratch']
  #allocation2 [shape = 'f32[8,128]{1,0:T(8,128)}', space=vmem, size = 0x1000, scoped, tag = 'scratch operand']
  %s0 = inlined_call_operand.vmem [shape: f32[16,128], index: 0, kind: input, shape index: {}]
  %s1 = inlined_call_operand.vmem [shape: f32[16,128], index: 1, kind: input, shape index: {}]
  %s2 = inlined_call_operand.hbm [shape: f32[1,1], index: 2, kind: output, shape index: {}]
  %s3 = sld [smem:[#allocation0]]
  $region26: #{combined_loss_pallas.1} parent=0
    _
  %s5 = ssub.s32 1, %s3
  %s6 = scalar_select 0, %s5, %s3
  $region1: #{combined_loss_pallas.1} parent=0
    #allocation3 [shape = 'u8[512]{0}', space=smem, size = 0x200, scoped, tag = 'output window, operand 0, single buffered']
    #allocation4 [shape = 's32[1]{0}', space=sflag, size = 0x4, scoped, tag = 'scoped memory for combined_loss_pallas.1']
    %7 = vsyncpa [#allocation4], 0
    // Predicated region
    $region2: #{combined_loss_pallas.1} parent=1 // pred_check
      _
    $region3: #{combined_loss_pallas.1} parent=1 // pred_check_branch
      %9 = sbr.rel (0) target = $region5
    $region4: #{combined_loss_pallas.1} parent=1 // pred_region
      %s10 = sadd.s32 0, 0
      %p11 = scmp.lt.s32.totalorder %s10, 0
      %s12 = scalar_select %p11, %s10, 0
      %s13 = smul.u32 2, %s12
      %p14 = scmp.lt.s32.totalorder %s13, 1
      %s15 = scalar_select %p14, %s13, 1
      %s16 = smul.addr %s15, 8
      %s17 = scalar_lea.vmem %s0, %s16
      %s18 = sadd.s32 0, 0
      %p19 = scmp.lt.s32.totalorder %s18, 0
      %s20 = scalar_select %p19, %s18, 0
      %s21 = smul.u32 2, %s20
    $region5: #{combined_loss_pallas.1} parent=1 // pred_fallthru
      _
    // Predicated region
    $region6: #{combined_loss_pallas.1} parent=1 // pred_check
      _
    $region7: #{combined_loss_pallas.1} parent=1 // pred_check_branch
      %23 = sbr.rel (0) target = $region9
    $region8: #{combined_loss_pallas.1} parent=1 // pred_region
      %s24 = sadd.s32 0, 0
      %p25 = scmp.lt.s32.totalorder %s24, 0
      %s26 = scalar_select %p25, %s24, 0
      %s27 = smul.u32 2, %s26
      %p28 = scmp.lt.s32.totalorder %s27, 1
      %s29 = scalar_select %p28, %s27, 1
      %s30 = smul.addr %s29, 8
      %s31 = scalar_lea.vmem %s1, %s30
      %s32 = sadd.s32 0, 0
      %p33 = scmp.lt.s32.totalorder %s32, 0
      %s34 = scalar_select %p33, %s32, 0
      %s35 = smul.u32 2, %s34
    $region9: #{combined_loss_pallas.1} parent=1 // pred_fallthru
      _
    %s36 = sadd.s32 0, 0
    %p37 = scmp.lt.s32.totalorder %s36, 0
    %s38 = scalar_select %p37, %s36, 0
    %s39 = smul.u32 2, %s38
    %p40 = scmp.lt.s32.totalorder %s39, 1
    %s41 = scalar_select %p40, %s39, 1
    %s42 = smul.addr %s41, 8
    %s43 = scalar_lea.vmem %s0, %s42
    %s44 = sadd.s32 0, 0
    %p45 = scmp.lt.s32.totalorder %s44, 0
    %s46 = scalar_select %p45, %s44, 0
    %s47 = smul.u32 2, %s46
    %p48 = scmp.lt.s32.totalorder %s47, 1
    %s49 = scalar_select %p48, %s47, 1
    %s50 = smul.addr %s49, 8
    %s51 = scalar_lea.vmem %s1, %s50
    %s52 = sadd.s32 0, 0
    %p53 = scmp.lt.s32.totalorder %s52, 0
    %s54 = scalar_select %p53, %s52, 0
    %s55 = smul.u32 2, %s54
    %p56 = scmp.lt.s32.totalorder %s55, 1
    %s57 = scalar_select %p56, %s55, 1
    %s58 = smul.addr %s57, 8
    %s59 = scalar_lea.vmem %s0, %s58
    %s60 = sadd.s32 0, 0
    %p61 = scmp.lt.s32.totalorder %s60, 0
    %s62 = scalar_select %p61, %s60, 0
    %s63 = smul.u32 2, %s62
    %s64 = sadd.s32 0, 0
    %p65 = scmp.lt.s32.totalorder %s64, 0
    %s66 = scalar_select %p65, %s64, 0
    %s67 = smul.u32 2, %s66
    %p68 = scmp.lt.s32.totalorder %s67, 1
    %s69 = scalar_select %p68, %s67, 1
    %s70 = smul.addr %s69, 8
    %s71 = scalar_lea.vmem %s1, %s70
    %s72 = sadd.s32 0, 0
    %p73 = scmp.lt.s32.totalorder %s72, 0
    %s74 = scalar_select %p73, %s72, 0
    %s75 = smul.u32 2, %s74
    %p76 = scmp.eq.s32.totalorder 0, 0
    // Predicated region
    $region10: #{combined_loss_pallas.1} parent=1 // pred_check
      %p77 = pneg %p76
    $region11: #{combined_loss_pallas.1} parent=1 // pred_check_branch
      %79 = sbr.rel (%p77) target = $region13
    $region12: #{combined_loss_pallas.1} parent=1 // pred_region
      %80 = vst [vmem:[#allocation2] sm:$0xff] 0.0
    $region13: #{combined_loss_pallas.1} parent=1 // pred_fallthru
      _
    %v81 = vld [vmem:[%s59] sm:$0xff]
    %v82 = vld [vmem:[%s59 + $0x8] sm:$0xff]
    %v83 = vld [vmem:[%s71] sm:$0xff]
    %v84 = vld [vmem:[%s71 + $0x8] sm:$0xff]
    %v85 = vmax.f32 %v81, 0.0
    %v86 = vmax.f32 %v82, 0.0
    %v87 = vmul.f32 %v81, %v83
    %v88 = vmul.f32 %v82, %v84
    %v89 = vsub.f32 %v85, %v87
    %v90 = vsub.f32 %v86, %v88
    %v91 = vand.u32 2147483647, %v81
    %v92 = vand.u32 2147483647, %v82
    %v93 = vsub.f32 0.0, %v91
    %v94 = vsub.f32 0.0, %v92
    %v95 = vmul.f32 %v93, 1.442695
    %v96 = vpow.pop %v95
    %v97 = vmul.f32 %v94, 1.442695
    %v98 = vpow.pop %v97
    %v99 = vadd.f32 %v96, 1.0
    %v100 = vlog2.pop %v99
    %v101 = vmul.f32 %v100, 0.6931472
    %v102 = vmul.f32 -0.5, %v96
    %v103 = vadd.f32 %v102, 1.0
    %v104 = vmul.f32 %v103, %v96
    %v105 = vand.u32 2147483647, %v96
    %vm106 = vcmp.lt.f32.partialorder %v105, 0.0004427343
    %v107 = vsel %vm106, %v104, %v101
    %v108 = vadd.f32 %v98, 1.0
    %v109 = vlog2.pop %v108
    %v110 = vmul.f32 %v109, 0.6931472
    %v111 = vmul.f32 -0.5, %v98
    %v112 = vadd.f32 %v111, 1.0
    %v113 = vmul.f32 %v112, %v98
    %v114 = vand.u32 2147483647, %v98
    %vm115 = vcmp.lt.f32.partialorder %v114, 0.0004427343
    %v116 = vsel %vm115, %v113, %v110
    %v117 = vadd.f32 %v89, %v107
    %v118 = vadd.f32 %v90, %v116
    %v119 = vsub.f32 0.0, %v117
    %v120 = vsub.f32 0.0, %v118
    %v121 = vmul.f32 %v119, 1.442695
    %v122 = vpow.pop %v121
    %v123 = vmul.f32 %v120, 1.442695
    %v124 = vpow.pop %v123
    %v125 = vsub.f32 1.0, %v122
    %v126 = vsub.f32 1.0, %v124
    %v127 = vmul.f32 %v125, %v125
    %v128 = vmul.f32 %v126, %v126
    %v129 = vmul.f32 %v127, 0.25
    %v130 = vmul.f32 %v128, 0.25
    %v131 = vmul.f32 %v129, %v117
    %v132 = vmul.f32 %v130, %v118
    %v133 = vadd.f32 %v117, %v131
    %v134 = vadd.f32 %v118, %v132
    %v135 = vld [vmem:[#allocation2] sm:$0xff]
    %v136 = vadd.f32 %v133, %v134
    %v137 = vadd.f32 %v135, %v136
    %138 = vst [vmem:[#allocation2] sm:$0xff] %v137
    // Predicated region
    $region14: #{combined_loss_pallas.1} parent=1 // pred_check
      %p139 = pneg %p76
    $region15: #{combined_loss_pallas.1} parent=1 // pred_check_branch
      %141 = sbr.rel (%p139) target = $region17
    $region16: #{combined_loss_pallas.1} parent=1 // pred_region
      %v142 = vld [vmem:[#allocation2] sm:$0xff]
      %143 = vadd.xlane.f32.xlu0 %v142
      %v144 = vpop.xlane.xlu0 %143
      %v145 = vrot.slane %v144, 4
      %v146 = vadd.f32 %v144, %v145
      %v147 = vrot.slane %v146, 2
      %v148 = vadd.f32 %v146, %v147
      %v149 = vrot.slane %v148, 1
      %v150 = vadd.f32 %v148, %v149
      %s151 = vtos %v150
      %s152 = scalar_lea.smem [#allocation3], 0
      %153 = sst [smem:[%s152]] %s151
    $region17: #{combined_loss_pallas.1} parent=1 // pred_fallthru
      _
    // Predicated region
    $region18: #{combined_loss_pallas.1} parent=1 // pred_check
      _
    $region19: #{combined_loss_pallas.1} parent=1 // pred_check_branch
      %155 = sbr.rel (0) target = $region21
    $region20: #{combined_loss_pallas.1} parent=1 // pred_region
      %157 = vsyncadd [#allocation4], 0
      %s159 = sshll.u32 %s2, 4
      %s160 = int_to_ptr.hbm [resolvable:$true] %s159
      %162 = dma.smem_to_hbm [#allocation3], 16, %s160, [#allocation4]
    $region21: #{combined_loss_pallas.1} parent=1 // pred_fallthru
      _
    // Predicated region
    $region22: #{combined_loss_pallas.1} parent=1 // pred_check
      _
    $region23: #{combined_loss_pallas.1} parent=1 // pred_check_branch
      %164 = sbr.rel (0) target = $region25
    $region24: #{combined_loss_pallas.1} parent=1 // pred_region
      %166 = dma.done [#allocation4], 16
    $region25: #{combined_loss_pallas.1} parent=1 // pred_fallthru
      _
    %167 = sfence
    %168 = vsyncpa [#allocation4], 1

</llo_original>
